<compile_context>
chip_gen: v6e
topology: v6e:2x2x1
jax: 0.10.0
libtpu: 0.0.40
codegen_flags: <defaults>
</compile_context>

<pallas_src>
import jax
import jax.numpy as jnp
from jax.experimental import pallas as pl
from jax.experimental.pallas import tpu as pltpu

LANES = 128  # TPU lane width; pad output features to a multiple of this.


def mlp_kernel(x_ref, w1_ref, b1_ref, w2_ref, b2_ref, w3_ref, b3_ref, o_ref):
    """Fused 3-layer MLP for one (TB, In) batch tile.

    Weights/biases are VMEM-resident across all grid steps (their index_map
    always returns block (0, 0)); only the x and out tiles stream per step.
    """
    # Hoist bias loads once per body (f32 adds on the VPU).
    b1 = b1_ref[...]
    b2 = b2_ref[...]
    b3 = b3_ref[...]

    # layer1 + ReLU  (bf16 MXU matmul, f32 accumulation)
    h1 = jnp.dot(x_ref[...], w1_ref[...], preferred_element_type=jnp.float32)
    h1 = jnp.maximum(h1 + b1, 0.0)

    # layer2 + ReLU
    h2 = jnp.dot(h1.astype(jnp.bfloat16), w2_ref[...],
                 preferred_element_type=jnp.float32)
    h2 = jnp.maximum(h2 + b2, 0.0)

    # dropout(p=0.3) — identity in eval/inference mode
    # TODO(synk): training-mode stochastic dropout (pltpu.prng_*) not emitted.

    # layer3 (no activation); output is 128-lane padded -> lane-dense store.
    y = jnp.dot(h2.astype(jnp.bfloat16), w3_ref[...],
                preferred_element_type=jnp.float32)
    o_ref[...] = (y + b3).astype(o_ref.dtype)


def neural_net_forward(x, params, *, block_rows=512):
    """x: (B, input_size) float32 -> (B, output_size) float32."""
    w1, b1, w2, b2, w3, b3 = params
    B, In = x.shape
    H = w1.shape[1]
    Out = w3.shape[1]

    # Output features padded to a lane-dense multiple of 128.
    out_p = pl.cdiv(Out, LANES) * LANES

    # Batch tile: multiple of 8 sublanes, capped at block_rows (512 default).
    tb = min(block_rows, pl.cdiv(B, 8) * 8)
    b_pad = pl.cdiv(B, tb) * tb

    # Cast activations/weights to bf16 once in the wrapper (halves DMA),
    # keep biases f32 for f32 accumulation + bias add in the kernel.
    xb = x.astype(jnp.bfloat16)
    if b_pad != B:
        xb = jnp.pad(xb, ((0, b_pad - B), (0, 0)))
    w3p = jnp.pad(w3, ((0, 0), (0, out_p - Out)))
    b3p = jnp.pad(b3, ((0, 0), (0, out_p - Out)))
    w1b = w1.astype(jnp.bfloat16)
    w2b = w2.astype(jnp.bfloat16)
    w3b = w3p.astype(jnp.bfloat16)

    grid = (b_pad // tb,)

    out = pl.pallas_call(
        mlp_kernel,
        out_shape=jax.ShapeDtypeStruct((b_pad, out_p), jnp.float32),
        grid=grid,
        in_specs=[
            # streamed per grid step
            pl.BlockSpec((tb, In), lambda i: (i, 0)),
            # weights & biases: resident across all grid steps
            pl.BlockSpec((In, H), lambda i: (0, 0)),
            pl.BlockSpec((1, H), lambda i: (0, 0)),
            pl.BlockSpec((H, H), lambda i: (0, 0)),
            pl.BlockSpec((1, H), lambda i: (0, 0)),
            pl.BlockSpec((H, out_p), lambda i: (0, 0)),
            pl.BlockSpec((1, out_p), lambda i: (0, 0)),
        ],
        out_specs=pl.BlockSpec((tb, out_p), lambda i: (i, 0)),
        compiler_params=pltpu.CompilerParams(
            dimension_semantics=("parallel",)),
    )(xb, w1b, b1, w2b, b2, w3b, b3p)

    # Strip batch padding and the zero-padded output lanes.
    return out[:B, :Out]


def init_params(key, input_size, hidden_size, output_size):
    """Deterministic parameter init (PyTorch-Linear-like uniform fan-in)."""
    ks = jax.random.split(key, 6)

    def linear(kw, kb, fan_in, fan_out):
        bound = 1.0 / jnp.sqrt(fan_in)
        w = jax.random.uniform(kw, (fan_in, fan_out), jnp.float32, -bound, bound)
        b = jax.random.uniform(kb, (1, fan_out), jnp.float32, -bound, bound)
        return w, b

    w1, b1 = linear(ks[0], ks[1], input_size, hidden_size)
    w2, b2 = linear(ks[2], ks[3], hidden_size, hidden_size)
    w3, b3 = linear(ks[4], ks[5], hidden_size, output_size)
    return (w1, b1, w2, b2, w3, b3)


if __name__ == "__main__":
    input_size, hidden_size, output_size = 32, 32, 2
    batch = 8

    key = jax.random.PRNGKey(0)
    kx, kp = jax.random.split(key)
    x = jax.random.normal(kx, (batch, input_size), jnp.float32)
    params = init_params(kp, input_size, hidden_size, output_size)

    out = neural_net_forward(x, params)
    out = jax.block_until_ready(out)

    # Pure-JAX reference with identical precision policy
    # (bf16 matmul operands, f32 accumulation, f32 bias adds, eval dropout).
    w1, b1, w2, b2, w3, b3 = params
    xb = x.astype(jnp.bfloat16)
    w1b, w2b, w3b = (w.astype(jnp.bfloat16) for w in (w1, w2, w3))
    ref = jnp.maximum(
        jnp.dot(xb, w1b, preferred_element_type=jnp.float32) + b1, 0.0)
    ref = jnp.maximum(
        jnp.dot(ref.astype(jnp.bfloat16), w2b,
                preferred_element_type=jnp.float32) + b2, 0.0)
    ref = jnp.dot(ref.astype(jnp.bfloat16), w3b,
                  preferred_element_type=jnp.float32) + b3

    assert out.shape == (batch, output_size)
    assert jnp.allclose(out, ref, atol=1e-4, rtol=1e-4)

    print("KERNEL_OK")
</pallas_src>

<mosaic_0001>
module attributes {stable_mosaic.version = 11 : i64} {
  func.func @mlp_kernel(%arg0: i32, %arg1: memref<8x32xbf16, #tpu.memory_space<vmem>>, %arg2: memref<32x32xbf16, #tpu.memory_space<vmem>>, %arg3: memref<1x32xf32, #tpu.memory_space<vmem>>, %arg4: memref<32x32xbf16, #tpu.memory_space<vmem>>, %arg5: memref<1x32xf32, #tpu.memory_space<vmem>>, %arg6: memref<32x128xbf16, #tpu.memory_space<vmem>>, %arg7: memref<1x128xf32, #tpu.memory_space<vmem>>, %arg8: memref<8x128xf32, #tpu.memory_space<vmem>>) attributes {dimension_semantics = [#tpu.dimension_semantics<parallel>], iteration_bounds = array<i64: 1>, scalar_prefetch = 0 : i64, scratch_operands = 0 : i64, tpu.core_type = #tpu.core_type<tc>, window_params = [{transform_indices = @transform_0, window_bounds = array<i64: 8, 32>}, {pipeline_mode = #tpu.pipeline_mode<synchronous>, transform_indices = @transform_1, window_bounds = array<i64: 32, 32>}, {pipeline_mode = #tpu.pipeline_mode<synchronous>, transform_indices = @transform_2, window_bounds = array<i64: 1, 32>}, {pipeline_mode = #tpu.pipeline_mode<synchronous>, transform_indices = @transform_3, window_bounds = array<i64: 32, 32>}, {pipeline_mode = #tpu.pipeline_mode<synchronous>, transform_indices = @transform_4, window_bounds = array<i64: 1, 32>}, {pipeline_mode = #tpu.pipeline_mode<synchronous>, transform_indices = @transform_5, window_bounds = array<i64: 32, 128>}, {pipeline_mode = #tpu.pipeline_mode<synchronous>, transform_indices = @transform_6, window_bounds = array<i64: 1, 128>}, {transform_indices = @transform_7, window_bounds = array<i64: 8, 128>}]} {
    %c0 = arith.constant 0 : index
    %c0_0 = arith.constant 0 : index
    %0 = vector.load %arg3[%c0, %c0_0] : memref<1x32xf32, #tpu.memory_space<vmem>>, vector<1x32xf32>
    %c0_1 = arith.constant 0 : index
    %c0_2 = arith.constant 0 : index
    %1 = vector.load %arg5[%c0_1, %c0_2] : memref<1x32xf32, #tpu.memory_space<vmem>>, vector<1x32xf32>
    %c0_3 = arith.constant 0 : index
    %c0_4 = arith.constant 0 : index
    %2 = vector.load %arg7[%c0_3, %c0_4] : memref<1x128xf32, #tpu.memory_space<vmem>>, vector<1x128xf32>
    %c0_5 = arith.constant 0 : index
    %c0_6 = arith.constant 0 : index
    %3 = vector.load %arg1[%c0_5, %c0_6] : memref<8x32xbf16, #tpu.memory_space<vmem>>, vector<8x32xbf16>
    %c0_7 = arith.constant 0 : index
    %c0_8 = arith.constant 0 : index
    %4 = vector.load %arg2[%c0_7, %c0_8] : memref<32x32xbf16, #tpu.memory_space<vmem>>, vector<32x32xbf16>
    %cst = arith.constant dense<0.000000e+00> : vector<8x32xf32>
    %5 = tpu.matmul %3, %4, %cst {dimension_numbers = #tpu.dot_dimension_numbers<[1], [0], [0], [1], [0, 0, 1, 1], [], []>} : vector<8x32xbf16>, vector<32x32xbf16>, vector<8x32xf32> -> vector<8x32xf32>
    %6 = vector.broadcast %0 : vector<1x32xf32> to vector<8x32xf32>
    %7 = arith.addf %5, %6 : vector<8x32xf32>
    %cst_9 = arith.constant 0.000000e+00 : f32
    %8 = vector.broadcast %cst_9 : f32 to vector<8x32xf32>
    %9 = arith.maximumf %7, %8 : vector<8x32xf32>
    %10 = arith.truncf %9 : vector<8x32xf32> to vector<8x32xbf16>
    %c0_10 = arith.constant 0 : index
    %c0_11 = arith.constant 0 : index
    %11 = vector.load %arg4[%c0_10, %c0_11] : memref<32x32xbf16, #tpu.memory_space<vmem>>, vector<32x32xbf16>
    %cst_12 = arith.constant dense<0.000000e+00> : vector<8x32xf32>
    %12 = tpu.matmul %10, %11, %cst_12 {dimension_numbers = #tpu.dot_dimension_numbers<[1], [0], [0], [1], [0, 0, 1, 1], [], []>} : vector<8x32xbf16>, vector<32x32xbf16>, vector<8x32xf32> -> vector<8x32xf32>
    %13 = vector.broadcast %1 : vector<1x32xf32> to vector<8x32xf32>
    %14 = arith.addf %12, %13 : vector<8x32xf32>
    %cst_13 = arith.constant 0.000000e+00 : f32
    %15 = vector.broadcast %cst_13 : f32 to vector<8x32xf32>
    %16 = arith.maximumf %14, %15 : vector<8x32xf32>
    %17 = arith.truncf %16 : vector<8x32xf32> to vector<8x32xbf16>
    %c0_14 = arith.constant 0 : index
    %c0_15 = arith.constant 0 : index
    %18 = vector.load %arg6[%c0_14, %c0_15] : memref<32x128xbf16, #tpu.memory_space<vmem>>, vector<32x128xbf16>
    %cst_16 = arith.constant dense<0.000000e+00> : vector<8x128xf32>
    %19 = tpu.matmul %17, %18, %cst_16 {dimension_numbers = #tpu.dot_dimension_numbers<[1], [0], [0], [1], [0, 0, 1, 1], [], []>} : vector<8x32xbf16>, vector<32x128xbf16>, vector<8x128xf32> -> vector<8x128xf32>
    %20 = vector.broadcast %2 : vector<1x128xf32> to vector<8x128xf32>
    %21 = arith.addf %19, %20 : vector<8x128xf32>
    %c0_17 = arith.constant 0 : index
    %c0_18 = arith.constant 0 : index
    %22 = vector.load %arg8[%c0_17, %c0_18] : memref<8x128xf32, #tpu.memory_space<vmem>>, vector<8x128xf32>
    tpu.vector_store %arg8[%c0_17, %c0_18], %21 {strides = array<i32>} : memref<8x128xf32, #tpu.memory_space<vmem>>, vector<8x128xf32>,
    return
  }
  func.func @transform_0(%arg0: i32) -> (i32, i32) {
    %c0_i32 = arith.constant 0 : i32
    %c0_i32_0 = arith.constant 0 : i32
    return %arg0, %c0_i32 : i32, i32
  }
  func.func @transform_1(%arg0: i32) -> (i32, i32) {
    %c0_i32 = arith.constant 0 : i32
    %c0_i32_0 = arith.constant 0 : i32
    %c0_i32_1 = arith.constant 0 : i32
    return %c0_i32, %c0_i32_0 : i32, i32
  }
  func.func @transform_2(%arg0: i32) -> (i32, i32) {
    %c0_i32 = arith.constant 0 : i32
    %c0_i32_0 = arith.constant 0 : i32
    %c0_i32_1 = arith.constant 0 : i32
    return %c0_i32, %c0_i32_0 : i32, i32
  }
  func.func @transform_3(%arg0: i32) -> (i32, i32) {
    %c0_i32 = arith.constant 0 : i32
    %c0_i32_0 = arith.constant 0 : i32
    %c0_i32_1 = arith.constant 0 : i32
    return %c0_i32, %c0_i32_0 : i32, i32
  }
  func.func @transform_4(%arg0: i32) -> (i32, i32) {
    %c0_i32 = arith.constant 0 : i32
    %c0_i32_0 = arith.constant 0 : i32
    %c0_i32_1 = arith.constant 0 : i32
    return %c0_i32, %c0_i32_0 : i32, i32
  }
  func.func @transform_5(%arg0: i32) -> (i32, i32) {
    %c0_i32 = arith.constant 0 : i32
    %c0_i32_0 = arith.constant 0 : i32
    %c0_i32_1 = arith.constant 0 : i32
    return %c0_i32, %c0_i32_0 : i32, i32
  }
  func.func @transform_6(%arg0: i32) -> (i32, i32) {
    %c0_i32 = arith.constant 0 : i32
    %c0_i32_0 = arith.constant 0 : i32
    %c0_i32_1 = arith.constant 0 : i32
    return %c0_i32, %c0_i32_0 : i32, i32
  }
  func.func @transform_7(%arg0: i32) -> (i32, i32) {
    %c0_i32 = arith.constant 0 : i32
    %c0_i32_0 = arith.constant 0 : i32
    return %arg0, %c0_i32 : i32, i32
  }
}

</mosaic_0001>

<llo_original>
// kernel: tpu_custom_call.1
$region0: #{tpu_custom_call.1}
  #allocation0 [shape = 'u32[]', space=smem, size = 0x4, offset = 0x4, fixed_abs, tag = 'smem constant byte address 0x4 - core index']
  #allocation1 [shape = 'u32[144,128]{1,0:T(1,128)}', space=vmem, size = 0x12000, scoped, tag = 'internal scratch']
  %s0 = inlined_call_operand.hbm [shape: bf16[8,32], index: 0, kind: input, shape index: {}]
  %s1 = inlined_call_operand.hbm [shape: bf16[32,32], index: 1, kind: input, shape index: {}]
  %s2 = inlined_call_operand.vmem [shape: f32[1,32], index: 2, kind: input, shape index: {}]
  %s3 = inlined_call_operand.hbm [shape: bf16[32,32], index: 3, kind: input, shape index: {}]
  %s4 = inlined_call_operand.vmem [shape: f32[1,32], index: 4, kind: input, shape index: {}]
  %s5 = inlined_call_operand.hbm [shape: bf16[32,128], index: 5, kind: input, shape index: {}]
  %s6 = inlined_call_operand.vmem [shape: f32[1,128], index: 6, kind: input, shape index: {}]
  %s7 = inlined_call_operand.hbm [shape: f32[8,128], index: 7, kind: output, shape index: {}]
  %s8 = sld [smem:[#allocation0]]
  $region54: #{tpu_custom_call.1} parent=0
    _
  %s10 = ssub.s32 1, %s8
  %s11 = scalar_select 0, %s10, %s8
  $region1: #{tpu_custom_call.1} parent=0
    #allocation2 [shape = 'u8[2048]{0}', space=vmem, size = 0x800, scoped, tag = 'input window, operand 0, single buffered']
    #allocation3 [shape = 's32[1]{0}', space=sflag, size = 0x4, scoped, tag = 'scoped memory for tpu_custom_call.1']
    #allocation4 [shape = 's32[1]{0}', space=sflag, size = 0x4, scoped, tag = 'scoped memory for tpu_custom_call.1']
    #allocation5 [shape = 'u8[8192]{0}', space=vmem, size = 0x2000, scoped, tag = 'input window, operand 1, single buffered']
    #allocation6 [shape = 's32[1]{0}', space=sflag, size = 0x4, scoped, tag = 'scoped memory for tpu_custom_call.1']
    #allocation7 [shape = 'u8[8192]{0}', space=vmem, size = 0x2000, scoped, tag = 'input window, operand 3, single buffered']
    #allocation8 [shape = 'u8[8192]{0}', space=vmem, size = 0x2000, scoped, tag = 'input window, operand 5, single buffered']
    #allocation9 [shape = 's32[1]{0}', space=sflag, size = 0x4, scoped, tag = 'scoped memory for tpu_custom_call.1']
    #allocation10 [shape = 'u8[4096]{0}', space=vmem, size = 0x1000, scoped, tag = 'output window, operand 0, single buffered']
    %12 = vsyncpa [#allocation3], 0
    %13 = vsyncpa [#allocation6], 0
    %14 = vsyncpa [#allocation9], 0
    %15 = vsyncpa [#allocation4], 0
    // Predicated region
    $region2: #{tpu_custom_call.1} parent=1 // pred_check
      _
    $region3: #{tpu_custom_call.1} parent=1 // pred_check_branch
      %17 = sbr.rel (0) target = $region5
    $region4: #{tpu_custom_call.1} parent=1 // pred_region
      %s19 = ssub.s32 64, 64
      %20 = vsyncadd [#allocation3], %s19
      %s22 = sshll.u32 [#allocation2], 4
      %s23 = int_to_ptr.vmem [resolvable:$true] %s22
      %25 = dma.hbm_to_vmem [thread:$0]  %s0, 64, %s23, [#allocation3]
    $region5: #{tpu_custom_call.1} parent=1 // pred_fallthru
      _
    // Predicated region
    $region6: #{tpu_custom_call.1} parent=1 // pred_check
      _
    $region7: #{tpu_custom_call.1} parent=1 // pred_check_branch
      %27 = sbr.rel (0) target = $region9
    $region8: #{tpu_custom_call.1} parent=1 // pred_region
      %s29 = ssub.s32 256, 256
      %30 = vsyncadd [#allocation6], %s29
      %s31 = sshll.u32 [#allocation5], 4
      %s32 = int_to_ptr.vmem [resolvable:$true] %s31
      %37 = dma.hbm_to_vmem [thread:$0]  %s1, 256, %s32, [#allocation6], 64, 64, 4
    $region9: #{tpu_custom_call.1} parent=1 // pred_fallthru
      _
    // Predicated region
    $region10: #{tpu_custom_call.1} parent=1 // pred_check
      _
    $region11: #{tpu_custom_call.1} parent=1 // pred_check_branch
      %39 = sbr.rel (0) target = $region13
    $region12: #{tpu_custom_call.1} parent=1 // pred_region
      _
    $region13: #{tpu_custom_call.1} parent=1 // pred_fallthru
      _
    // Predicated region
    $region14: #{tpu_custom_call.1} parent=1 // pred_check
      _
    $region15: #{tpu_custom_call.1} parent=1 // pred_check_branch
      %41 = sbr.rel (0) target = $region17
    $region16: #{tpu_custom_call.1} parent=1 // pred_region
      %s43 = ssub.s32 256, 256
      %44 = vsyncadd [#allocation6], %s43
      %s45 = sshll.u32 [#allocation7], 4
      %s46 = int_to_ptr.vmem [resolvable:$true] %s45
      %51 = dma.hbm_to_vmem [thread:$0]  %s3, 256, %s46, [#allocation6], 64, 64, 4
    $region17: #{tpu_custom_call.1} parent=1 // pred_fallthru
      _
    // Predicated region
    $region18: #{tpu_custom_call.1} parent=1 // pred_check
      _
    $region19: #{tpu_custom_call.1} parent=1 // pred_check_branch
      %53 = sbr.rel (0) target = $region21
    $region20: #{tpu_custom_call.1} parent=1 // pred_region
      _
    $region21: #{tpu_custom_call.1} parent=1 // pred_fallthru
      _
    // Predicated region
    $region22: #{tpu_custom_call.1} parent=1 // pred_check
      _
    $region23: #{tpu_custom_call.1} parent=1 // pred_check_branch
      %55 = sbr.rel (0) target = $region25
    $region24: #{tpu_custom_call.1} parent=1 // pred_region
      %s57 = ssub.s32 256, 256
      %58 = vsyncadd [#allocation9], %s57
      %s59 = sshll.u32 [#allocation8], 4
      %s60 = int_to_ptr.vmem [resolvable:$true] %s59
      %65 = dma.hbm_to_vmem [thread:$0]  %s5, 256, %s60, [#allocation9], 64, 64, 4
    $region25: #{tpu_custom_call.1} parent=1 // pred_fallthru
      _
    // Predicated region
    $region26: #{tpu_custom_call.1} parent=1 // pred_check
      _
    $region27: #{tpu_custom_call.1} parent=1 // pred_check_branch
      %67 = sbr.rel (0) target = $region29
    $region28: #{tpu_custom_call.1} parent=1 // pred_region
      _
    $region29: #{tpu_custom_call.1} parent=1 // pred_fallthru
      _
    // Predicated region
    $region30: #{tpu_custom_call.1} parent=1 // pred_check
      _
    $region31: #{tpu_custom_call.1} parent=1 // pred_check_branch
      %69 = sbr.rel (0) target = $region33
    $region32: #{tpu_custom_call.1} parent=1 // pred_region
      %70 = dma.done [#allocation3], 64
    $region33: #{tpu_custom_call.1} parent=1 // pred_fallthru
      _
    // Predicated region
    $region34: #{tpu_custom_call.1} parent=1 // pred_check
      _
    $region35: #{tpu_custom_call.1} parent=1 // pred_check_branch
      %72 = sbr.rel (0) target = $region37
    $region36: #{tpu_custom_call.1} parent=1 // pred_region
      %73 = dma.done [#allocation6], 256
    $region37: #{tpu_custom_call.1} parent=1 // pred_fallthru
      _
    // Predicated region
    $region38: #{tpu_custom_call.1} parent=1 // pred_check
      _
    $region39: #{tpu_custom_call.1} parent=1 // pred_check_branch
      %75 = sbr.rel (0) target = $region41
    $region40: #{tpu_custom_call.1} parent=1 // pred_region
      %76 = dma.done [#allocation6], 256
    $region41: #{tpu_custom_call.1} parent=1 // pred_fallthru
      _
    // Predicated region
    $region42: #{tpu_custom_call.1} parent=1 // pred_check
      _
    $region43: #{tpu_custom_call.1} parent=1 // pred_check_branch
      %78 = sbr.rel (0) target = $region45
    $region44: #{tpu_custom_call.1} parent=1 // pred_region
      %79 = dma.done [#allocation9], 256
    $region45: #{tpu_custom_call.1} parent=1 // pred_fallthru
      _
    %v81 = vld [vmem:[%s2] sm:$0x1]
    %v82 = vld [vmem:[%s4] sm:$0x1]
    %v83 = vld [vmem:[%s6] sm:$0x1]
    %v84 = vld [vmem:[#allocation2] sm:$0xf]
    %v85 = vld [vmem:[#allocation5] sm:$0xf]
    %v86 = vld [vmem:[#allocation5 + $0x4] sm:$0xf]
    %v87 = vld [vmem:[#allocation5 + $0x8] sm:$0xf]
    %v88 = vld [vmem:[#allocation5 + $0xc] sm:$0xf]
    %v90 = vlaneseq
    %v91 = vshrl.u32 %v90, 7
    %v92 = vsub.s32 0, %v91
    %v93 = vrot.slane %v81, %v92
    %v99 = vunpack.c.l.b16 %v85
    %v100 = vunpack.c.l.b16 %v86
    %v101 = vunpack.c.l.b16 %v87
    %v102 = vunpack.c.l.b16 %v88
    %v103 = vpack.c.b16 %v100, %v99
    %v104 = vpack.c.b16 %v102, %v101
    %vm107 = vcmask 261120
    %v109 = vsel %vm107, %v84, 0
    %111 = vmatprep.subr.bf16.mxu0 0
    %112 = vmatpush1.bf16.msra.mxu0 0
    %113 = vmatprep.subr.bf16.mxu0 0
    %114 = vmatpush1.bf16.msra.mxu0 0
    %115 = vmatprep.subr.bf16.mxu0 0
    %116 = vmatpush1.bf16.msra.mxu0 0
    %117 = vmatprep.subr.bf16.mxu0 0
    %118 = vmatpush1.bf16.msra.mxu0 0
    %119 = vmatprep.subr.bf16.mxu0 0
    %120 = vmatpush1.bf16.msra.mxu0 0
    %121 = vmatprep.subr.bf16.mxu0 0
    %122 = vmatpush1.bf16.msra.mxu0 0
    %123 = vmatprep.subr.bf16.mxu0 0
    %124 = vmatpush1.bf16.msra.mxu0 %v104
    %125 = vmatprep.subr.bf16.mxu0 0
    %126 = vmatpush1.bf16.msra.mxu0 %v103
    %127 = vmatprep.subr.bf16.mxu0 0
    %128 = vmatpush2.bf16.msra.mxu0 0
    %129 = vmatprep.subr.bf16.mxu0 0
    %130 = vmatpush2.bf16.msra.mxu0 0
    %131 = vmatprep.subr.bf16.mxu0 0
    %132 = vmatpush2.bf16.msra.mxu0 0
    %133 = vmatprep.subr.bf16.mxu0 0
    %134 = vmatpush2.bf16.msra.mxu0 0
    %135 = vmatprep.subr.bf16.mxu0 0
    %136 = vmatpush2.bf16.msra.mxu0 0
    %137 = vmatprep.subr.bf16.mxu0 0
    %138 = vmatpush2.bf16.msra.mxu0 0
    %139 = vmatprep.subr.bf16.mxu0 0
    %140 = vmatpush2.bf16.msra.mxu0 0
    %141 = vmatprep.subr.bf16.mxu0 0
    %142 = vmatpush2.bf16.msra.mxu0 0
    %143 = vmatprep.mubr.bf16.mxu0 0
    %144 = vmatmul.mubr.bf16.gmra.mxu0 %v109
    %v145 = vpop.f32.mrf.mxu0
    %v146 = vadd.f32 %v93, %v145
    %v147 = vpop.f32.mrf.mxu0
    %v148 = vpop.f32.mrf.mxu0
    %v149 = vpop.f32.mrf.mxu0
    %150 = vdwg.mxu0
    %v151 = vmax.f32 %v146, 0.0
    %v152 = vpack.c.bf16 %v151, %v151
    %v153 = vld [vmem:[#allocation7] sm:$0xf]
    %v154 = vld [vmem:[#allocation7 + $0x4] sm:$0xf]
    %v155 = vld [vmem:[#allocation7 + $0x8] sm:$0xf]
    %v156 = vld [vmem:[#allocation7 + $0xc] sm:$0xf]
    %v158 = vlaneseq
    %v159 = vshrl.u32 %v158, 7
    %v160 = vsub.s32 0, %v159
    %v161 = vrot.slane %v82, %v160
    %v167 = vunpack.c.l.b16 %v153
    %v168 = vunpack.c.l.b16 %v154
    %v169 = vunpack.c.l.b16 %v155
    %v170 = vunpack.c.l.b16 %v156
    %v171 = vpack.c.b16 %v168, %v167
    %v172 = vpack.c.b16 %v170, %v169
    %v176 = vsel %vm107, %v152, 0
    %178 = vmatprep.subr.bf16.mxu0 0
    %179 = vmatpush1.bf16.msra.mxu0 0
    %180 = vmatprep.subr.bf16.mxu0 0
    %181 = vmatpush1.bf16.msra.mxu0 0
    %182 = vmatprep.subr.bf16.mxu0 0
    %183 = vmatpush1.bf16.msra.mxu0 0
    %184 = vmatprep.subr.bf16.mxu0 0
    %185 = vmatpush1.bf16.msra.mxu0 0
    %186 = vmatprep.subr.bf16.mxu0 0
    %187 = vmatpush1.bf16.msra.mxu0 0
    %188 = vmatprep.subr.bf16.mxu0 0
    %189 = vmatpush1.bf16.msra.mxu0 0
    %190 = vmatprep.subr.bf16.mxu0 0
    %191 = vmatpush1.bf16.msra.mxu0 %v172
    %192 = vmatprep.subr.bf16.mxu0 0
    %193 = vmatpush1.bf16.msra.mxu0 %v171
    %194 = vmatprep.subr.bf16.mxu0 0
    %195 = vmatpush2.bf16.msra.mxu0 0
    %196 = vmatprep.subr.bf16.mxu0 0
    %197 = vmatpush2.bf16.msra.mxu0 0
    %198 = vmatprep.subr.bf16.mxu0 0
    %199 = vmatpush2.bf16.msra.mxu0 0
    %200 = vmatprep.subr.bf16.mxu0 0
    %201 = vmatpush2.bf16.msra.mxu0 0
    %202 = vmatprep.subr.bf16.mxu0 0
    %203 = vmatpush2.bf16.msra.mxu0 0
    %204 = vmatprep.subr.bf16.mxu0 0
    %205 = vmatpush2.bf16.msra.mxu0 0
    %206 = vmatprep.subr.bf16.mxu0 0
    %207 = vmatpush2.bf16.msra.mxu0 0
    %208 = vmatprep.subr.bf16.mxu0 0
    %209 = vmatpush2.bf16.msra.mxu0 0
    %210 = vmatprep.mubr.bf16.mxu0 0
    %211 = vmatmul.mubr.bf16.gmra.mxu0 %v176
    %v212 = vpop.f32.mrf.mxu0
    %v213 = vadd.f32 %v161, %v212
    %v214 = vpop.f32.mrf.mxu0
    %v215 = vpop.f32.mrf.mxu0
    %v216 = vpop.f32.mrf.mxu0
    %217 = vdwg.mxu0
    %v218 = vmax.f32 %v213, 0.0
    %v219 = vpack.c.bf16 %v218, %v218
    %v220 = vld [vmem:[#allocation8] sm:$0xf]
    %v221 = vld [vmem:[#allocation8 + $0x4] sm:$0xf]
    %v222 = vld [vmem:[#allocation8 + $0x8] sm:$0xf]
    %v223 = vld [vmem:[#allocation8 + $0xc] sm:$0xf]
    %v225 = vlaneseq
    %v226 = vshrl.u32 %v225, 7
    %v227 = vsub.s32 0, %v226
    %v228 = vrot.slane %v83, %v227
    %v234 = vunpack.c.l.b16 %v220
    %v235 = vunpack.c.l.b16 %v221
    %v236 = vunpack.c.l.b16 %v222
    %v237 = vunpack.c.l.b16 %v223
    %v238 = vpack.c.b16 %v235, %v234
    %v239 = vpack.c.b16 %v237, %v236
    %v243 = vsel %vm107, %v219, 0
    %245 = vmatprep.subr.bf16.mxu0 0
    %246 = vmatpush1.bf16.msra.mxu0 0
    %247 = vmatprep.subr.bf16.mxu0 0
    %248 = vmatpush1.bf16.msra.mxu0 0
    %249 = vmatprep.subr.bf16.mxu0 0
    %250 = vmatpush1.bf16.msra.mxu0 0
    %251 = vmatprep.subr.bf16.mxu0 0
    %252 = vmatpush1.bf16.msra.mxu0 0
    %253 = vmatprep.subr.bf16.mxu0 0
    %254 = vmatpush1.bf16.msra.mxu0 0
    %255 = vmatprep.subr.bf16.mxu0 0
    %256 = vmatpush1.bf16.msra.mxu0 0
    %257 = vmatprep.subr.bf16.mxu0 0
    %258 = vmatpush1.bf16.msra.mxu0 %v239
    %259 = vmatprep.subr.bf16.mxu0 0
    %260 = vmatpush1.bf16.msra.mxu0 %v238
    %261 = vmatprep.subr.bf16.mxu0 0
    %262 = vmatpush2.bf16.msra.mxu0 0
    %263 = vmatprep.subr.bf16.mxu0 0
    %264 = vmatpush2.bf16.msra.mxu0 0
    %265 = vmatprep.subr.bf16.mxu0 0
    %266 = vmatpush2.bf16.msra.mxu0 0
    %267 = vmatprep.subr.bf16.mxu0 0
    %268 = vmatpush2.bf16.msra.mxu0 0
    %269 = vmatprep.subr.bf16.mxu0 0
    %270 = vmatpush2.bf16.msra.mxu0 0
    %271 = vmatprep.subr.bf16.mxu0 0
    %272 = vmatpush2.bf16.msra.mxu0 0
    %273 = vmatprep.subr.bf16.mxu0 0
    %274 = vmatpush2.bf16.msra.mxu0 0
    %275 = vmatprep.subr.bf16.mxu0 0
    %276 = vmatpush2.bf16.msra.mxu0 0
    %277 = vmatprep.mubr.bf16.mxu0 0
    %278 = vmatmul.mubr.bf16.gmra.mxu0 %v243
    %v279 = vpop.f32.mrf.mxu0
    %v280 = vadd.f32 %v228, %v279
    %v281 = vpop.f32.mrf.mxu0
    %v282 = vpop.f32.mrf.mxu0
    %v283 = vpop.f32.mrf.mxu0
    %284 = vdwg.mxu0
    %285 = vst [vmem:[#allocation10] sm:$0xff] %v280
    // Predicated region
    $region46: #{tpu_custom_call.1} parent=1 // pred_check
      _
    $region47: #{tpu_custom_call.1} parent=1 // pred_check_branch
      %287 = sbr.rel (0) target = $region49
    $region48: #{tpu_custom_call.1} parent=1 // pred_region
      %s289 = ssub.s32 128, 128
      %290 = vsyncadd [#allocation4], %s289
      %s292 = sshll.u32 [#allocation10], 4
      %s293 = int_to_ptr.vmem [resolvable:$true] %s292
      %295 = dma.vmem_to_hbm [thread:$0]  %s293, 128, %s7, [#allocation4]
    $region49: #{tpu_custom_call.1} parent=1 // pred_fallthru
      _
    // Predicated region
    $region50: #{tpu_custom_call.1} parent=1 // pred_check
      _
    $region51: #{tpu_custom_call.1} parent=1 // pred_check_branch
      %297 = sbr.rel (0) target = $region53
    $region52: #{tpu_custom_call.1} parent=1 // pred_region
      %298 = dma.done [#allocation4], 128
    $region53: #{tpu_custom_call.1} parent=1 // pred_fallthru
      _
    %299 = vsyncpa [#allocation3], 1
    %300 = vsyncpa [#allocation6], 1
    %301 = vsyncpa [#allocation9], 1
    %302 = vsyncpa [#allocation4], 1

</llo_original>
